<compile_context>
chip_gen: v6e
topology: v6e:2x2x1
jax: 0.10.0
libtpu: 0.0.40
codegen_flags: <defaults>
</compile_context>

<pallas_src>
import functools
import math

import jax
import jax.numpy as jnp
from jax.experimental import pallas as pl
from jax.experimental.pallas import tpu as pltpu

_LANE = 128      # lane width (last-dim alignment for dense stores)
_SUBLANE = 8     # sublane width (second-to-last dim alignment, f32)


def _round_up(x, m):
    return (x + m - 1) // m * m


# --------------------------------------------------------------------------
# Kernel
# --------------------------------------------------------------------------
def _attention_net_kernel(num_layers, x_ref, *refs):
    """Fused forward: (Linear -> ReLU) x (num_layers-1) -> Linear -> sigmoid.

    refs = (W1t, b1, ..., WNt, bN, out_ref); weights pre-transposed to
    [in, out] and VMEM-resident (untiled) for the whole grid.
    """
    out_ref = refs[-1]
    params = refs[:-1]

    h = x_ref[...]                               # already in the weights' dtype
    for layer in range(num_layers):
        w = params[2 * layer][...]
        b = params[2 * layer + 1][...]
        acc = jnp.dot(h, w, preferred_element_type=jnp.float32)   # MXU, f32 acc
        acc = acc + b.astype(jnp.float32)
        if layer < num_layers - 1:
            # ReLU; keep intermediates in the weight dtype (bf16 halves vreg /
            # VMEM pressure on v6e/v7x; on f32 params this is a no-op).
            h = jnp.maximum(acc, 0.0).astype(w.dtype)
        else:
            h = jax.nn.sigmoid(acc)              # sigmoid head (EUP, f32)
    out_ref[...] = h.astype(out_ref.dtype)


# --------------------------------------------------------------------------
# One-time parameter relayout (NOT in the per-call hot path)
# --------------------------------------------------------------------------
def prepare_params(params, hidden_layers=1, dtype=jnp.float32):
    """params: dict name -> (W [out,in], b [out]) in PyTorch layout.

    Returns (flat, out_features):
      flat = (W1t, b1, ..., WNt, bN) with W pre-transposed to [in,out].
      Output/lane dims are zero-padded to multiples of 128 (lane-dense stores
      and intermediates).  The FIRST layer's contraction dim is only padded to
      the dtype's sublane multiple (8 f32 / 16 bf16) so small nets don't
      stream 4x extra x bytes or do 16x zero MACs.
    Zero padding is forward-exact: padded lanes stay zero through
    Linear+ReLU and padded output columns/rows are sliced off by the caller.
    """
    sub = _SUBLANE * max(1, 4 // jnp.dtype(dtype).itemsize)
    names = ["l1"] + ["l%d" % i for i in (2, 3, 4) if hidden_layers >= i] + ["l5"]

    flat = []
    prev_out_p = None
    out_features = None
    for idx, name in enumerate(names):
        W, b = params[name]
        W = jnp.asarray(W, dtype)                # [out, in]
        b = jnp.asarray(b, dtype)                # [out]
        out_f, in_f = W.shape
        if idx == 0:
            # Contraction dim of the first matmul: sublane-pad when small,
            # lane-pad when large.
            in_p = _round_up(in_f, sub) if in_f < _LANE else _round_up(in_f, _LANE)
        else:
            if in_f > prev_out_p:
                raise ValueError("layer %s in_features mismatch" % name)
            in_p = prev_out_p                    # must match previous out pad
        out_p = _round_up(out_f, _LANE)          # lane-dense outputs
        Wt = jnp.zeros((in_p, out_p), dtype).at[:in_f, :out_f].set(W.T)
        bp = jnp.zeros((1, out_p), dtype).at[0, :out_f].set(b)
        flat += [Wt, bp]
        prev_out_p = out_p
        out_features = out_f
    return tuple(flat), out_features


# --------------------------------------------------------------------------
# Forward wrapper
# --------------------------------------------------------------------------
def attention_net_forward(x, flat_params, out_features, *, tile_b=None,
                          out_dtype=None):
    """x: [batch, in_features].  flat_params from prepare_params."""
    batch, in_f = x.shape
    num_layers = len(flat_params) // 2
    p_dtype = flat_params[0].dtype
    in_pad = int(flat_params[0].shape[0])
    out_pad = int(flat_params[-2].shape[1])
    out_dtype = x.dtype if out_dtype is None else jnp.dtype(out_dtype)

    p_item = jnp.dtype(p_dtype).itemsize
    o_item = jnp.dtype(out_dtype).itemsize
    # Sublane multiple for the narrowest streamed dtype (8 f32 / 16 bf16).
    row_mult = _SUBLANE * max(1, 4 // min(p_item, o_item))

    # ---- Generation-aware VMEM budget (v7x: 64 MiB, v5e/v6e: 128 MiB) ----
    try:
        vmem_cap = int(pltpu.get_tpu_info().vmem_capacity_bytes)
    except Exception:                      # conservative fallback
        vmem_cap = 64 << 20
    vmem_budget = int(vmem_cap * 0.8)      # headroom for Mosaic scratch/sems

    # ---- Batch tile ----
    if tile_b is None:
        tile_b = 512 if vmem_cap > (80 << 20) else 256   # v5e/v6e vs v7x
    # Keep >= 2 grid steps when the batch permits: the "parallel" axis only
    # feeds v7x's second TensorCore if the grid has at least 2 steps.
    if batch >= 2 * row_mult:
        tile_b = min(tile_b, _round_up((batch + 1) // 2, row_mult))
    tile_b = max(row_mult, _round_up(min(tile_b, batch), row_mult))

    # ---- VMEM accounting: resident params (single copy) + double-buffered
    #      x/out tiles + f32 activation slabs between the unrolled layers ----
    param_bytes = sum(int(p.size) * jnp.dtype(p.dtype).itemsize
                      for p in flat_params)
    max_feat = max([in_pad, out_pad] + [int(w.shape[1])
                                        for w in flat_params[::2]])

    def _needed(tb):
        tiles = 2 * tb * (in_pad * p_item + out_pad * o_item)
        acts = 3 * tb * max_feat * 4            # f32 acc / h slabs in the body
        return param_bytes + tiles + acts + (2 << 20)

    while tile_b > row_mult and _needed(tile_b) > vmem_budget:
        tile_b = max(row_mult, _round_up(tile_b // 2, row_mult))
    vmem_limit = int(min(max(_needed(tile_b), 32 << 20), vmem_budget))

    batch_pad = _round_up(batch, tile_b)
    grid = (batch_pad // tile_b,)

    # Pad + cast x ONCE here (bf16 weights => bf16 x stream, half the DMA).
    if (batch_pad, in_pad) != (batch, in_f) or x.dtype != p_dtype:
        xp = jnp.zeros((batch_pad, in_pad), p_dtype).at[:batch, :in_f].set(
            x.astype(p_dtype))
    else:
        xp = x

    x_spec = pl.BlockSpec((tile_b, in_pad), lambda i: (i, 0))
    o_spec = pl.BlockSpec((tile_b, out_pad), lambda i: (i, 0))
    # Weights/biases: untiled, single-buffered, VMEM-resident for all steps.
    p_specs = [pl.BlockSpec(memory_space=pltpu.MemorySpace.VMEM)
               for _ in flat_params]

    flops = 2 * batch_pad * sum(int(w.shape[0]) * int(w.shape[1])
                                for w in flat_params[::2])
    cost = pl.CostEstimate(
        flops=flops,
        transcendentals=batch_pad * out_pad,          # sigmoid head
        bytes_accessed=(batch_pad * in_pad * p_item
                        + batch_pad * out_pad * o_item
                        + param_bytes),
    )

    kernel = functools.partial(_attention_net_kernel, num_layers)
    out = pl.pallas_call(
        kernel,
        out_shape=jax.ShapeDtypeStruct((batch_pad, out_pad), out_dtype),
        grid=grid,
        in_specs=[x_spec] + p_specs,
        out_specs=o_spec,
        compiler_params=pltpu.CompilerParams(
            dimension_semantics=("parallel",),
            vmem_limit_bytes=vmem_limit,
        ),
        cost_estimate=cost,
    )(xp, *flat_params)
    return out[:batch, :out_features]


# --------------------------------------------------------------------------
# Reference + init helpers
# --------------------------------------------------------------------------
def _init_linear(key, size):
    """PyTorch-style nn.Linear init: U(-1/sqrt(in), 1/sqrt(in))."""
    kw, kb = jax.random.split(key)
    bound = 1.0 / math.sqrt(size)
    W = jax.random.uniform(kw, (size, size), jnp.float32, -bound, bound)
    b = jax.random.uniform(kb, (size,), jnp.float32, -bound, bound)
    return W, b


def _reference_forward(x, params, hidden_layers=1):
    def lin(name, h):
        W, b = params[name]
        return h @ W.T + b

    h = jax.nn.relu(lin("l1", x))
    if hidden_layers >= 2:
        h = jax.nn.relu(lin("l2", h))
    if hidden_layers >= 3:
        h = jax.nn.relu(lin("l3", h))
    if hidden_layers >= 4:
        h = jax.nn.relu(lin("l4", h))
    return jax.nn.sigmoid(lin("l5", h))


if __name__ == "__main__":
    key = jax.random.PRNGKey(0)
    batch, size = 8, 32

    k_x, k1, k2, k3, k4, k5 = jax.random.split(key, 6)
    x = jax.random.normal(k_x, (batch, size), jnp.float32)

    params = {
        "l1": _init_linear(k1, size),
        "l2": _init_linear(k2, size),
        "l3": _init_linear(k3, size),
        "l4": _init_linear(k4, size),
        "l5": _init_linear(k5, size),
    }

    ok = True

    # f32 weights, small batch (single tile, small-K path).
    for hidden_layers in (1, 3, 4):
        flat, out_f = prepare_params(params, hidden_layers, dtype=jnp.float32)
        out = jax.block_until_ready(attention_net_forward(x, flat, out_f))
        ref = _reference_forward(x, params, hidden_layers)
        if not jnp.allclose(out, ref, atol=1e-5, rtol=1e-5):
            ok = False

    # Larger batch exercising the batch grid (>=2 steps, padding + slicing)
    # with bf16 weights / bf16 x stream + f32 accumulation.
    xb = jax.random.normal(jax.random.PRNGKey(1), (200, size), jnp.float32)
    flat_bf16, out_f = prepare_params(params, 3, dtype=jnp.bfloat16)
    out_b = jax.block_until_ready(
        attention_net_forward(xb, flat_bf16, out_f, tile_b=128))
    ref_b = _reference_forward(xb, params, 3)
    if not jnp.allclose(out_b.astype(jnp.float32), ref_b, atol=3e-2, rtol=3e-2):
        ok = False

    if ok:
        print("KERNEL_OK")
</pallas_src>

<mosaic_0001>
module attributes {stable_mosaic.version = 11 : i64} {
  func.func @_attention_net_kernel(%arg0: i32, %arg1: memref<8x32xf32, #tpu.memory_space<vmem>>, %arg2: memref<32x128xf32, #tpu.memory_space<vmem>>, %arg3: memref<1x128xf32, #tpu.memory_space<vmem>>, %arg4: memref<128x128xf32, #tpu.memory_space<vmem>>, %arg5: memref<1x128xf32, #tpu.memory_space<vmem>>, %arg6: memref<8x128xf32, #tpu.memory_space<vmem>>) attributes {dimension_semantics = [#tpu.dimension_semantics<parallel>], iteration_bounds = array<i64: 1>, scalar_prefetch = 0 : i64, scratch_operands = 0 : i64, tpu.core_type = #tpu.core_type<tc>, window_params = [{transform_indices = @transform_0, window_bounds = array<i64: 8, 32>}, {pipeline_mode = #tpu.pipeline_mode<synchronous>, transform_indices = @transform_1, window_bounds = array<i64: 32, 128>}, {pipeline_mode = #tpu.pipeline_mode<synchronous>, transform_indices = @transform_2, window_bounds = array<i64: 1, 128>}, {pipeline_mode = #tpu.pipeline_mode<synchronous>, transform_indices = @transform_3, window_bounds = array<i64: 128, 128>}, {pipeline_mode = #tpu.pipeline_mode<synchronous>, transform_indices = @transform_4, window_bounds = array<i64: 1, 128>}, {transform_indices = @transform_5, window_bounds = array<i64: 8, 128>}]} {
    %c0 = arith.constant 0 : index
    %c0_0 = arith.constant 0 : index
    %0 = vector.load %arg1[%c0, %c0_0] : memref<8x32xf32, #tpu.memory_space<vmem>>, vector<8x32xf32>
    %c0_1 = arith.constant 0 : index
    %c0_2 = arith.constant 0 : index
    %1 = vector.load %arg2[%c0_1, %c0_2] : memref<32x128xf32, #tpu.memory_space<vmem>>, vector<32x128xf32>
    %c0_3 = arith.constant 0 : index
    %c0_4 = arith.constant 0 : index
    %2 = vector.load %arg3[%c0_3, %c0_4] : memref<1x128xf32, #tpu.memory_space<vmem>>, vector<1x128xf32>
    %cst = arith.constant dense<0.000000e+00> : vector<8x128xf32>
    %3 = tpu.matmul %0, %1, %cst {dimension_numbers = #tpu.dot_dimension_numbers<[1], [0], [0], [1], [0, 0, 1, 1], [], []>} : vector<8x32xf32>, vector<32x128xf32>, vector<8x128xf32> -> vector<8x128xf32>
    %4 = vector.broadcast %2 : vector<1x128xf32> to vector<8x128xf32>
    %5 = arith.addf %3, %4 : vector<8x128xf32>
    %cst_5 = arith.constant 0.000000e+00 : f32
    %6 = vector.broadcast %cst_5 : f32 to vector<8x128xf32>
    %7 = arith.maximumf %5, %6 : vector<8x128xf32>
    %c0_6 = arith.constant 0 : index
    %c0_7 = arith.constant 0 : index
    %8 = vector.load %arg4[%c0_6, %c0_7] : memref<128x128xf32, #tpu.memory_space<vmem>>, vector<128x128xf32>
    %c0_8 = arith.constant 0 : index
    %c0_9 = arith.constant 0 : index
    %9 = vector.load %arg5[%c0_8, %c0_9] : memref<1x128xf32, #tpu.memory_space<vmem>>, vector<1x128xf32>
    %cst_10 = arith.constant dense<0.000000e+00> : vector<8x128xf32>
    %10 = tpu.matmul %7, %8, %cst_10 {dimension_numbers = #tpu.dot_dimension_numbers<[1], [0], [0], [1], [0, 0, 1, 1], [], []>} : vector<8x128xf32>, vector<128x128xf32>, vector<8x128xf32> -> vector<8x128xf32>
    %11 = vector.broadcast %9 : vector<1x128xf32> to vector<8x128xf32>
    %12 = arith.addf %10, %11 : vector<8x128xf32>
    %13 = arith.negf %12 : vector<8x128xf32>
    %14 = math.exp %13 : vector<8x128xf32>
    %cst_11 = arith.constant 1.000000e+00 : f32
    %15 = vector.broadcast %cst_11 : f32 to vector<8x128xf32>
    %16 = arith.addf %15, %14 : vector<8x128xf32>
    %17 = arith.divf %15, %16 : vector<8x128xf32>
    %c0_12 = arith.constant 0 : index
    %c0_13 = arith.constant 0 : index
    %18 = vector.load %arg6[%c0_12, %c0_13] : memref<8x128xf32, #tpu.memory_space<vmem>>, vector<8x128xf32>
    tpu.vector_store %arg6[%c0_12, %c0_13], %17 {strides = array<i32>} : memref<8x128xf32, #tpu.memory_space<vmem>>, vector<8x128xf32>,
    return
  }
  func.func @transform_0(%arg0: i32) -> (i32, i32) {
    %c0_i32 = arith.constant 0 : i32
    %c0_i32_0 = arith.constant 0 : i32
    return %arg0, %c0_i32 : i32, i32
  }
  func.func @transform_1(%arg0: i32) -> (i32, i32) {
    %c0_i32 = arith.constant 0 : i32
    %c0_i32_0 = arith.constant 0 : i32
    %c0_i32_1 = arith.constant 0 : i32
    return %c0_i32, %c0_i32_0 : i32, i32
  }
  func.func @transform_2(%arg0: i32) -> (i32, i32) {
    %c0_i32 = arith.constant 0 : i32
    %c0_i32_0 = arith.constant 0 : i32
    %c0_i32_1 = arith.constant 0 : i32
    return %c0_i32, %c0_i32_0 : i32, i32
  }
  func.func @transform_3(%arg0: i32) -> (i32, i32) {
    %c0_i32 = arith.constant 0 : i32
    %c0_i32_0 = arith.constant 0 : i32
    %c0_i32_1 = arith.constant 0 : i32
    return %c0_i32, %c0_i32_0 : i32, i32
  }
  func.func @transform_4(%arg0: i32) -> (i32, i32) {
    %c0_i32 = arith.constant 0 : i32
    %c0_i32_0 = arith.constant 0 : i32
    %c0_i32_1 = arith.constant 0 : i32
    return %c0_i32, %c0_i32_0 : i32, i32
  }
  func.func @transform_5(%arg0: i32) -> (i32, i32) {
    %c0_i32 = arith.constant 0 : i32
    %c0_i32_0 = arith.constant 0 : i32
    return %arg0, %c0_i32 : i32, i32
  }
}

</mosaic_0001>

<llo_original>
// kernel: tpu_custom_call.1
$region0: #{tpu_custom_call.1}
  #allocation0 [shape = 'u32[]', space=smem, size = 0x4, offset = 0x4, fixed_abs, tag = 'smem constant byte address 0x4 - core index']
  #allocation1 [shape = 'u32[144,128]{1,0:T(1,128)}', space=vmem, size = 0x12000, scoped, tag = 'internal scratch']
  %s0 = inlined_call_operand.hbm [shape: f32[8,32], index: 0, kind: input, shape index: {}]
  %s1 = inlined_call_operand.hbm [shape: f32[32,128], index: 1, kind: input, shape index: {}]
  %s2 = inlined_call_operand.vmem [shape: f32[1,128], index: 2, kind: input, shape index: {}]
  %s3 = inlined_call_operand.hbm [shape: f32[128,128], index: 3, kind: input, shape index: {}]
  %s4 = inlined_call_operand.vmem [shape: f32[1,128], index: 4, kind: input, shape index: {}]
  %s5 = inlined_call_operand.hbm [shape: f32[8,128], index: 5, kind: output, shape index: {}]
  %s6 = sld [smem:[#allocation0]]
  $region42: #{tpu_custom_call.1} parent=0
    _
  %s8 = ssub.s32 1, %s6
  %s9 = scalar_select 0, %s8, %s6
  $region1: #{tpu_custom_call.1} parent=0
    #allocation2 [shape = 'u8[4096]{0}', space=vmem, size = 0x1000, scoped, tag = 'input window, operand 0, single buffered']
    #allocation3 [shape = 's32[1]{0}', space=sflag, size = 0x4, scoped, tag = 'scoped memory for tpu_custom_call.1']
    #allocation4 [shape = 's32[1]{0}', space=sflag, size = 0x4, scoped, tag = 'scoped memory for tpu_custom_call.1']
    #allocation5 [shape = 'u8[16384]{0}', space=vmem, size = 0x4000, scoped, tag = 'input window, operand 1, single buffered']
    #allocation6 [shape = 's32[1]{0}', space=sflag, size = 0x4, scoped, tag = 'scoped memory for tpu_custom_call.1']
    #allocation7 [shape = 'u8[65536]{0}', space=vmem, size = 0x10000, scoped, tag = 'input window, operand 3, single buffered']
    #allocation8 [shape = 'u8[4096]{0}', space=vmem, size = 0x1000, scoped, tag = 'output window, operand 0, single buffered']
    %10 = vsyncpa [#allocation3], 0
    %11 = vsyncpa [#allocation6], 0
    %12 = vsyncpa [#allocation4], 0
    // Predicated region
    $region2: #{tpu_custom_call.1} parent=1 // pred_check
      _
    $region3: #{tpu_custom_call.1} parent=1 // pred_check_branch
      %14 = sbr.rel (0) target = $region5
    $region4: #{tpu_custom_call.1} parent=1 // pred_region
      %s16 = ssub.s32 128, 128
      %17 = vsyncadd [#allocation3], %s16
      %s19 = sshll.u32 [#allocation2], 4
      %s20 = int_to_ptr.vmem [resolvable:$true] %s19
      %22 = dma.hbm_to_vmem [thread:$0]  %s0, 128, %s20, [#allocation3]
    $region5: #{tpu_custom_call.1} parent=1 // pred_fallthru
      _
    // Predicated region
    $region6: #{tpu_custom_call.1} parent=1 // pred_check
      _
    $region7: #{tpu_custom_call.1} parent=1 // pred_check_branch
      %24 = sbr.rel (0) target = $region9
    $region8: #{tpu_custom_call.1} parent=1 // pred_region
      %s26 = ssub.s32 512, 512
      %27 = vsyncadd [#allocation6], %s26
      %s28 = sshll.u32 [#allocation5], 4
      %s29 = int_to_ptr.vmem [resolvable:$true] %s28
      %34 = dma.hbm_to_vmem [thread:$0]  %s1, 512, %s29, [#allocation6], 128, 128, 8
    $region9: #{tpu_custom_call.1} parent=1 // pred_fallthru
      _
    // Predicated region
    $region10: #{tpu_custom_call.1} parent=1 // pred_check
      _
    $region11: #{tpu_custom_call.1} parent=1 // pred_check_branch
      %36 = sbr.rel (0) target = $region13
    $region12: #{tpu_custom_call.1} parent=1 // pred_region
      _
    $region13: #{tpu_custom_call.1} parent=1 // pred_fallthru
      _
    // Predicated region
    $region14: #{tpu_custom_call.1} parent=1 // pred_check
      _
    $region15: #{tpu_custom_call.1} parent=1 // pred_check_branch
      %38 = sbr.rel (0) target = $region17
    $region16: #{tpu_custom_call.1} parent=1 // pred_region
      %s40 = ssub.s32 2048, 2048
      %41 = vsyncadd [#allocation6], %s40
      %s42 = sshll.u32 [#allocation7], 4
      %s43 = int_to_ptr.vmem [resolvable:$true] %s42
      %48 = dma.hbm_to_vmem [thread:$0]  %s3, 2048, %s43, [#allocation6], 128, 128, 8
    $region17: #{tpu_custom_call.1} parent=1 // pred_fallthru
      _
    // Predicated region
    $region18: #{tpu_custom_call.1} parent=1 // pred_check
      _
    $region19: #{tpu_custom_call.1} parent=1 // pred_check_branch
      %50 = sbr.rel (0) target = $region21
    $region20: #{tpu_custom_call.1} parent=1 // pred_region
      _
    $region21: #{tpu_custom_call.1} parent=1 // pred_fallthru
      _
    // Predicated region
    $region22: #{tpu_custom_call.1} parent=1 // pred_check
      _
    $region23: #{tpu_custom_call.1} parent=1 // pred_check_branch
      %52 = sbr.rel (0) target = $region25
    $region24: #{tpu_custom_call.1} parent=1 // pred_region
      %53 = dma.done [#allocation3], 128
    $region25: #{tpu_custom_call.1} parent=1 // pred_fallthru
      _
    // Predicated region
    $region26: #{tpu_custom_call.1} parent=1 // pred_check
      _
    $region27: #{tpu_custom_call.1} parent=1 // pred_check_branch
      %55 = sbr.rel (0) target = $region29
    $region28: #{tpu_custom_call.1} parent=1 // pred_region
      %56 = dma.done [#allocation6], 512
    $region29: #{tpu_custom_call.1} parent=1 // pred_fallthru
      _
    // Predicated region
    $region30: #{tpu_custom_call.1} parent=1 // pred_check
      _
    $region31: #{tpu_custom_call.1} parent=1 // pred_check_branch
      %58 = sbr.rel (0) target = $region33
    $region32: #{tpu_custom_call.1} parent=1 // pred_region
      %59 = dma.done [#allocation6], 2048
    $region33: #{tpu_custom_call.1} parent=1 // pred_fallthru
      _
    %v60 = vld [vmem:[#allocation2] sm:$0xff]
    %v61 = vld [vmem:[#allocation5] sm:$0xff]
    %v62 = vld [vmem:[#allocation5 + $0x8] sm:$0xff]
    %v63 = vld [vmem:[#allocation5 + $0x10] sm:$0xff]
    %v64 = vld [vmem:[#allocation5 + $0x18] sm:$0xff]
    %v65 = vld [vmem:[%s2] sm:$0x1]
    %v67 = vlaneseq
    %v68 = vshrl.u32 %v67, 7
    %v69 = vsub.s32 0, %v68
    %v70 = vrot.slane %v65, %v69
    %vm72 = vcmask 261120
    %v74 = vsel %vm72, %v60, 0
    %76 = vmatprep.subr.mxu0 0.0
    %77 = vmatpush1.msra.mxu0 0.0
    %78 = vmatprep.subr.mxu0 0.0
    %79 = vmatpush1.msra.mxu0 0.0
    %80 = vmatprep.subr.mxu0 0.0
    %81 = vmatpush1.msra.mxu0 0.0
    %82 = vmatprep.subr.mxu0 0.0
    %83 = vmatpush1.msra.mxu0 0.0
    %84 = vmatprep.subr.mxu0 0.0
    %85 = vmatpush1.msra.mxu0 0.0
    %86 = vmatprep.subr.mxu0 0.0
    %87 = vmatpush1.msra.mxu0 0.0
    %88 = vmatprep.subr.mxu0 0.0
    %89 = vmatpush1.msra.mxu0 0.0
    %90 = vmatprep.subr.mxu0 0.0
    %91 = vmatpush1.msra.mxu0 0.0
    %92 = vmatprep.subr.mxu0 0.0
    %93 = vmatpush1.msra.mxu0 0.0
    %94 = vmatprep.subr.mxu0 0.0
    %95 = vmatpush1.msra.mxu0 0.0
    %96 = vmatprep.subr.mxu0 0.0
    %97 = vmatpush1.msra.mxu0 0.0
    %98 = vmatprep.subr.mxu0 0.0
    %99 = vmatpush1.msra.mxu0 0.0
    %100 = vmatprep.subr.mxu0 0.0
    %101 = vmatpush1.msra.mxu0 %v64
    %102 = vmatprep.subr.mxu0 0.0
    %103 = vmatpush1.msra.mxu0 %v63
    %104 = vmatprep.subr.mxu0 0.0
    %105 = vmatpush1.msra.mxu0 %v62
    %106 = vmatprep.subr.mxu0 0.0
    %107 = vmatpush1.msra.mxu0 %v61
    %108 = vmatprep.subr.mxu0 0.0
    %109 = vmatpush2.msra.mxu0 0.0
    %110 = vmatprep.subr.mxu0 0.0
    %111 = vmatpush2.msra.mxu0 0.0
    %112 = vmatprep.subr.mxu0 0.0
    %113 = vmatpush2.msra.mxu0 0.0
    %114 = vmatprep.subr.mxu0 0.0
    %115 = vmatpush2.msra.mxu0 0.0
    %116 = vmatprep.subr.mxu0 0.0
    %117 = vmatpush2.msra.mxu0 0.0
    %118 = vmatprep.subr.mxu0 0.0
    %119 = vmatpush2.msra.mxu0 0.0
    %120 = vmatprep.subr.mxu0 0.0
    %121 = vmatpush2.msra.mxu0 0.0
    %122 = vmatprep.subr.mxu0 0.0
    %123 = vmatpush2.msra.mxu0 0.0
    %124 = vmatprep.subr.mxu0 0.0
    %125 = vmatpush2.msra.mxu0 0.0
    %126 = vmatprep.subr.mxu0 0.0
    %127 = vmatpush2.msra.mxu0 0.0
    %128 = vmatprep.subr.mxu0 0.0
    %129 = vmatpush2.msra.mxu0 0.0
    %130 = vmatprep.subr.mxu0 0.0
    %131 = vmatpush2.msra.mxu0 0.0
    %132 = vmatprep.subr.mxu0 0.0
    %133 = vmatpush2.msra.mxu0 0.0
    %134 = vmatprep.subr.mxu0 0.0
    %135 = vmatpush2.msra.mxu0 0.0
    %136 = vmatprep.subr.mxu0 0.0
    %137 = vmatpush2.msra.mxu0 0.0
    %138 = vmatprep.subr.mxu0 0.0
    %139 = vmatpush2.msra.mxu0 0.0
    %140 = vmatprep.mubr.f32.mxu0 0.0
    %141 = vmatmul.mubr.f32.gmra.mxu0 %v74
    %v142 = vpop.f32.mrf.mxu0
    %v143 = vadd.f32 %v70, %v142
    %v144 = vpop.f32.mrf.mxu0
    %145 = vdwg.mxu0
    %v146 = vmax.f32 %v143, 0.0
    %v147 = vld [vmem:[#allocation7] sm:$0xff]
    %v148 = vld [vmem:[#allocation7 + $0x8] sm:$0xff]
    %v149 = vld [vmem:[#allocation7 + $0x10] sm:$0xff]
    %v150 = vld [vmem:[#allocation7 + $0x18] sm:$0xff]
    %v151 = vld [vmem:[#allocation7 + $0x20] sm:$0xff]
    %v152 = vld [vmem:[#allocation7 + $0x28] sm:$0xff]
    %v153 = vld [vmem:[#allocation7 + $0x30] sm:$0xff]
    %v154 = vld [vmem:[#allocation7 + $0x38] sm:$0xff]
    %v155 = vld [vmem:[#allocation7 + $0x40] sm:$0xff]
    %v156 = vld [vmem:[#allocation7 + $0x48] sm:$0xff]
    %v157 = vld [vmem:[#allocation7 + $0x50] sm:$0xff]
    %v158 = vld [vmem:[#allocation7 + $0x58] sm:$0xff]
    %v159 = vld [vmem:[#allocation7 + $0x60] sm:$0xff]
    %v160 = vld [vmem:[#allocation7 + $0x68] sm:$0xff]
    %v161 = vld [vmem:[#allocation7 + $0x70] sm:$0xff]
    %v162 = vld [vmem:[#allocation7 + $0x78] sm:$0xff]
    %v163 = vld [vmem:[%s4] sm:$0x1]
    %v165 = vlaneseq
    %v166 = vshrl.u32 %v165, 7
    %v167 = vsub.s32 0, %v166
    %v168 = vrot.slane %v163, %v167
    %170 = vmatprep.subr.mxu0 0.0
    %171 = vmatpush1.msra.mxu0 %v162
    %172 = vmatprep.subr.mxu0 0.0
    %173 = vmatpush1.msra.mxu0 %v161
    %174 = vmatprep.subr.mxu0 0.0
    %175 = vmatpush1.msra.mxu0 %v160
    %176 = vmatprep.subr.mxu0 0.0
    %177 = vmatpush1.msra.mxu0 %v159
    %178 = vmatprep.subr.mxu0 0.0
    %179 = vmatpush1.msra.mxu0 %v158
    %180 = vmatprep.subr.mxu0 0.0
    %181 = vmatpush1.msra.mxu0 %v157
    %182 = vmatprep.subr.mxu0 0.0
    %183 = vmatpush1.msra.mxu0 %v156
    %184 = vmatprep.subr.mxu0 0.0
    %185 = vmatpush1.msra.mxu0 %v155
    %186 = vmatprep.subr.mxu0 0.0
    %187 = vmatpush1.msra.mxu0 %v154
    %188 = vmatprep.subr.mxu0 0.0
    %189 = vmatpush1.msra.mxu0 %v153
    %190 = vmatprep.subr.mxu0 0.0
    %191 = vmatpush1.msra.mxu0 %v152
    %192 = vmatprep.subr.mxu0 0.0
    %193 = vmatpush1.msra.mxu0 %v151
    %194 = vmatprep.subr.mxu0 0.0
    %195 = vmatpush1.msra.mxu0 %v150
    %196 = vmatprep.subr.mxu0 0.0
    %197 = vmatpush1.msra.mxu0 %v149
    %198 = vmatprep.subr.mxu0 0.0
    %199 = vmatpush1.msra.mxu0 %v148
    %200 = vmatprep.subr.mxu0 0.0
    %201 = vmatpush1.msra.mxu0 %v147
    %202 = vmatprep.subr.mxu0 0.0
    %203 = vmatpush2.msra.mxu0 0.0
    %204 = vmatprep.subr.mxu0 0.0
    %205 = vmatpush2.msra.mxu0 0.0
    %206 = vmatprep.subr.mxu0 0.0
    %207 = vmatpush2.msra.mxu0 0.0
    %208 = vmatprep.subr.mxu0 0.0
    %209 = vmatpush2.msra.mxu0 0.0
    %210 = vmatprep.subr.mxu0 0.0
    %211 = vmatpush2.msra.mxu0 0.0
    %212 = vmatprep.subr.mxu0 0.0
    %213 = vmatpush2.msra.mxu0 0.0
    %214 = vmatprep.subr.mxu0 0.0
    %215 = vmatpush2.msra.mxu0 0.0
    %216 = vmatprep.subr.mxu0 0.0
    %217 = vmatpush2.msra.mxu0 0.0
    %218 = vmatprep.subr.mxu0 0.0
    %219 = vmatpush2.msra.mxu0 0.0
    %220 = vmatprep.subr.mxu0 0.0
    %221 = vmatpush2.msra.mxu0 0.0
    %222 = vmatprep.subr.mxu0 0.0
    %223 = vmatpush2.msra.mxu0 0.0
    %224 = vmatprep.subr.mxu0 0.0
    %225 = vmatpush2.msra.mxu0 0.0
    %226 = vmatprep.subr.mxu0 0.0
    %227 = vmatpush2.msra.mxu0 0.0
    %228 = vmatprep.subr.mxu0 0.0
    %229 = vmatpush2.msra.mxu0 0.0
    %230 = vmatprep.subr.mxu0 0.0
    %231 = vmatpush2.msra.mxu0 0.0
    %232 = vmatprep.subr.mxu0 0.0
    %233 = vmatpush2.msra.mxu0 0.0
    %234 = vmatprep.mubr.f32.mxu0 0.0
    %235 = vmatmul.mubr.f32.gmra.mxu0 %v146
    %v236 = vpop.f32.mrf.mxu0
    %v237 = vadd.f32 %v168, %v236
    %v238 = vpop.f32.mrf.mxu0
    %239 = vdwg.mxu0
    %v240 = vxor.u32 %v237, 2147483648
    %v241 = vmul.f32 %v240, 1.442695
    %v242 = vpow.pop %v241
    %v243 = vadd.f32 %v242, 1.0
    %v244 = vrcp.pop %v243
    %v245 = vmul.f32 1.0, %v244
    %246 = vst [vmem:[#allocation8] sm:$0xff] %v245
    // Predicated region
    $region34: #{tpu_custom_call.1} parent=1 // pred_check
      _
    $region35: #{tpu_custom_call.1} parent=1 // pred_check_branch
      %248 = sbr.rel (0) target = $region37
    $region36: #{tpu_custom_call.1} parent=1 // pred_region
      %s250 = ssub.s32 128, 128
      %251 = vsyncadd [#allocation4], %s250
      %s253 = sshll.u32 [#allocation8], 4
      %s254 = int_to_ptr.vmem [resolvable:$true] %s253
      %256 = dma.vmem_to_hbm [thread:$0]  %s254, 128, %s5, [#allocation4]
    $region37: #{tpu_custom_call.1} parent=1 // pred_fallthru
      _
    // Predicated region
    $region38: #{tpu_custom_call.1} parent=1 // pred_check
      _
    $region39: #{tpu_custom_call.1} parent=1 // pred_check_branch
      %258 = sbr.rel (0) target = $region41
    $region40: #{tpu_custom_call.1} parent=1 // pred_region
      %259 = dma.done [#allocation4], 128
    $region41: #{tpu_custom_call.1} parent=1 // pred_fallthru
      _
    %260 = vsyncpa [#allocation3], 1
    %261 = vsyncpa [#allocation6], 1
    %262 = vsyncpa [#allocation4], 1

</llo_original>
